<compile_context>
chip_gen: v6e
topology: v6e:2x2x1
jax: 0.10.0
libtpu: 0.0.40
codegen_flags: <defaults>
</compile_context>

<pallas_src>
import functools

import jax
import jax.numpy as jnp
from jax.experimental import pallas as pl
from jax.experimental.pallas import tpu as pltpu


def lstm_encoder_kernel(x_ref, wih_ref, whh_ref, b_ref, h_out_ref):
    """Runs the full LSTM recurrence in VMEM and writes the final hidden state.

    x_ref:   (T, E)   input sequence (batch=1 squeezed away)
    wih_ref: (E, 4H)  input->gates weights (transposed torch weight_ih_l0)
    whh_ref: (H, 4H)  hidden->gates weights (transposed torch weight_hh_l0)
    b_ref:   (1, 4H)  bias_ih + bias_hh
    h_out_ref: (1, H) final hidden state
    """
    T = x_ref.shape[0]
    H = h_out_ref.shape[-1]

    # ---- Hoisted, non-recurrent work ------------------------------------
    # One (T, E) x (E, 4H) matmul + bias for every timestep at once; this has
    # no sequential dependency, so it stays off the recurrence critical path.
    gates_x = (
        jnp.dot(x_ref[...], wih_ref[...], preferred_element_type=jnp.float32)
        + b_ref[...]
    )  # (T, 4H)

    # Hidden->gates weights held in vregs across all steps (4 vregs at H=32).
    whh = whh_ref[...]  # (H, 4H)

    # ---- Fully unrolled recurrence (T is static at trace time) -----------
    h = jnp.zeros((1, H), jnp.float32)
    c = jnp.zeros((1, H), jnp.float32)

    for t in range(T):
        # Only the recurrent GEMV remains per step.
        gates = gates_x[t : t + 1, :] + jnp.dot(
            h, whh, preferred_element_type=jnp.float32
        )  # (1, 4H)

        # Two full-width EUP passes instead of four narrow (1, H) ones.
        sig = jax.nn.sigmoid(gates)  # used for i, f, o
        tnh = jnp.tanh(gates)        # used for g
        i = sig[:, 0:H]
        f = sig[:, H : 2 * H]
        g = tnh[:, 2 * H : 3 * H]
        o = sig[:, 3 * H : 4 * H]

        c = f * c + i * g
        h = o * jnp.tanh(c)

    h_out_ref[...] = h


def prepare_encoder_params(params):
    """One-time parameter prep (transposes + bias sum) done outside forward."""
    w_ih, w_hh, b_ih, b_hh = params  # torch layouts: (4H,E),(4H,H),(4H,),(4H,)
    wih_t = jnp.transpose(w_ih)                      # (E, 4H)
    whh_t = jnp.transpose(w_hh)                      # (H, 4H)
    bias = (b_ih + b_hh).reshape(1, -1)              # (1, 4H)
    return wih_t, whh_t, bias


@functools.partial(jax.jit, static_argnames=("encoder_size", "n_dir"))
def encoder_forward(X, prepped_params, encoder_size, n_dir=1):
    """X: (seq_len, 1, em_len) float32.  Returns (1, 1, encoder_size * n_dir)."""
    # TODO(synk): bidirectional (n_dir == 2) path not exercised by the
    # reference defaults; only the unidirectional LSTM is implemented.
    T, B, E = X.shape
    assert B == 1
    H = encoder_size

    wih_t, whh_t, bias = prepped_params
    x2d = X.reshape(T, E)  # squeeze batch=1

    vmem = pltpu.MemorySpace.VMEM
    h_final = pl.pallas_call(
        lstm_encoder_kernel,
        out_shape=jax.ShapeDtypeStruct((1, H), jnp.float32),
        in_specs=[
            pl.BlockSpec(memory_space=vmem),
            pl.BlockSpec(memory_space=vmem),
            pl.BlockSpec(memory_space=vmem),
            pl.BlockSpec(memory_space=vmem),
        ],
        out_specs=pl.BlockSpec(memory_space=vmem),
    )(x2d, wih_t, whh_t, bias)

    # TODO(synk): for long sequences, stream X / gates_x with a 1-D grid over
    # T chunks and a resident h/c scratch; unnecessary at T=8.
    return h_final.reshape(1, 1, H * n_dir)


def reference_forward(X, params, encoder_size):
    """Pure-JAX reference (same math as torch.nn.LSTM, batch=1)."""
    w_ih, w_hh, b_ih, b_hh = params
    H = encoder_size
    T = X.shape[0]
    h = jnp.zeros((H,), jnp.float32)
    c = jnp.zeros((H,), jnp.float32)

    def step(carry, x_t):
        h, c = carry
        gates = x_t @ w_ih.T + h @ w_hh.T + b_ih + b_hh
        i = jax.nn.sigmoid(gates[0:H])
        f = jax.nn.sigmoid(gates[H:2 * H])
        g = jnp.tanh(gates[2 * H:3 * H])
        o = jax.nn.sigmoid(gates[3 * H:4 * H])
        c = f * c + i * g
        h = o * jnp.tanh(c)
        return (h, c), None

    (h, c), _ = jax.lax.scan(step, (h, c), X.reshape(T, -1))
    return h.reshape(1, 1, H)


if __name__ == "__main__":
    # Small shapes consistent with the module: em_len=32, encoder_size=32,
    # n_dir=1, seq_len=8, batch=1 (the module hard-codes batch size 1).
    code_size, em_len, encoder_size, n_dir = 16, 32, 32, 1
    seq_len = 8

    key = jax.random.PRNGKey(0)
    k_x, k_wih, k_whh, k_bih, k_bhh = jax.random.split(key, 5)
    scale = 1.0 / jnp.sqrt(encoder_size)

    X = jax.random.normal(k_x, (seq_len, 1, em_len), jnp.float32)
    params = (
        jax.random.uniform(k_wih, (4 * encoder_size, em_len), jnp.float32, -scale, scale),
        jax.random.uniform(k_whh, (4 * encoder_size, encoder_size), jnp.float32, -scale, scale),
        jax.random.uniform(k_bih, (4 * encoder_size,), jnp.float32, -scale, scale),
        jax.random.uniform(k_bhh, (4 * encoder_size,), jnp.float32, -scale, scale),
    )
    # TODO(synk): code_layer (nn.Linear) is initialized in __init__ but never
    # used in forward, so it is intentionally omitted.

    # One-time parameter preparation (transposes + bias sum) outside forward.
    prepped = jax.tree.map(jax.block_until_ready, prepare_encoder_params(params))

    out = encoder_forward(X, prepped, encoder_size, n_dir)
    jax.block_until_ready(out)

    ref = reference_forward(X, params, encoder_size)
    assert out.shape == (1, 1, encoder_size * n_dir)
    assert jnp.allclose(out, ref, atol=1e-5, rtol=1e-5)

    print("KERNEL_OK")
</pallas_src>

<mosaic_0001>
module attributes {stable_mosaic.version = 11 : i64} {
  func.func @lstm_encoder_kernel(%arg0: memref<8x32xf32, #tpu.memory_space<vmem>>, %arg1: memref<32x128xf32, #tpu.memory_space<vmem>>, %arg2: memref<32x128xf32, #tpu.memory_space<vmem>>, %arg3: memref<1x128xf32, #tpu.memory_space<vmem>>, %arg4: memref<1x32xf32, #tpu.memory_space<vmem>>) attributes {dimension_semantics = [], scalar_prefetch = 0 : i64, scratch_operands = 0 : i64, tpu.core_type = #tpu.core_type<tc>} {
    %c0 = arith.constant 0 : index
    %c0_0 = arith.constant 0 : index
    %0 = vector.load %arg0[%c0, %c0_0] : memref<8x32xf32, #tpu.memory_space<vmem>>, vector<8x32xf32>
    %c0_1 = arith.constant 0 : index
    %c0_2 = arith.constant 0 : index
    %1 = vector.load %arg1[%c0_1, %c0_2] : memref<32x128xf32, #tpu.memory_space<vmem>>, vector<32x128xf32>
    %cst = arith.constant dense<0.000000e+00> : vector<8x128xf32>
    %2 = tpu.matmul %0, %1, %cst {dimension_numbers = #tpu.dot_dimension_numbers<[1], [0], [0], [1], [0, 0, 1, 1], [], []>} : vector<8x32xf32>, vector<32x128xf32>, vector<8x128xf32> -> vector<8x128xf32>
    %c0_3 = arith.constant 0 : index
    %c0_4 = arith.constant 0 : index
    %3 = vector.load %arg3[%c0_3, %c0_4] : memref<1x128xf32, #tpu.memory_space<vmem>>, vector<1x128xf32>
    %4 = vector.broadcast %3 : vector<1x128xf32> to vector<8x128xf32>
    %5 = arith.addf %2, %4 : vector<8x128xf32>
    %c0_5 = arith.constant 0 : index
    %c0_6 = arith.constant 0 : index
    %6 = vector.load %arg2[%c0_5, %c0_6] : memref<32x128xf32, #tpu.memory_space<vmem>>, vector<32x128xf32>
    %cst_7 = arith.constant 0.000000e+00 : f32
    %7 = vector.broadcast %cst_7 : f32 to vector<1x32xf32>
    %cst_8 = arith.constant 0.000000e+00 : f32
    %8 = vector.broadcast %cst_8 : f32 to vector<1x32xf32>
    %9 = vector.extract_strided_slice %5 {offsets = [0, 0], sizes = [1, 128], strides = [1, 1]} : vector<8x128xf32> to vector<1x128xf32>
    %cst_9 = arith.constant dense<0.000000e+00> : vector<1x128xf32>
    %10 = tpu.matmul %7, %6, %cst_9 {dimension_numbers = #tpu.dot_dimension_numbers<[1], [0], [0], [1], [0, 0, 1, 1], [], []>} : vector<1x32xf32>, vector<32x128xf32>, vector<1x128xf32> -> vector<1x128xf32>
    %11 = arith.addf %9, %10 : vector<1x128xf32>
    %12 = arith.negf %11 : vector<1x128xf32>
    %13 = math.exp %12 : vector<1x128xf32>
    %cst_10 = arith.constant 1.000000e+00 : f32
    %14 = vector.broadcast %cst_10 : f32 to vector<1x128xf32>
    %15 = arith.addf %14, %13 : vector<1x128xf32>
    %16 = arith.divf %14, %15 : vector<1x128xf32>
    %17 = math.tanh %11 : vector<1x128xf32>
    %18 = vector.extract_strided_slice %16 {offsets = [0, 0], sizes = [1, 32], strides = [1, 1]} : vector<1x128xf32> to vector<1x32xf32>
    %19 = vector.extract_strided_slice %16 {offsets = [0, 32], sizes = [1, 32], strides = [1, 1]} : vector<1x128xf32> to vector<1x32xf32>
    %20 = vector.extract_strided_slice %17 {offsets = [0, 64], sizes = [1, 32], strides = [1, 1]} : vector<1x128xf32> to vector<1x32xf32>
    %21 = vector.extract_strided_slice %16 {offsets = [0, 96], sizes = [1, 32], strides = [1, 1]} : vector<1x128xf32> to vector<1x32xf32>
    %22 = arith.mulf %19, %8 : vector<1x32xf32>
    %23 = arith.mulf %18, %20 : vector<1x32xf32>
    %24 = arith.addf %22, %23 : vector<1x32xf32>
    %25 = math.tanh %24 : vector<1x32xf32>
    %26 = arith.mulf %21, %25 : vector<1x32xf32>
    %27 = vector.extract_strided_slice %5 {offsets = [1, 0], sizes = [1, 128], strides = [1, 1]} : vector<8x128xf32> to vector<1x128xf32>
    %cst_11 = arith.constant dense<0.000000e+00> : vector<1x128xf32>
    %28 = tpu.matmul %26, %6, %cst_11 {dimension_numbers = #tpu.dot_dimension_numbers<[1], [0], [0], [1], [0, 0, 1, 1], [], []>} : vector<1x32xf32>, vector<32x128xf32>, vector<1x128xf32> -> vector<1x128xf32>
    %29 = arith.addf %27, %28 : vector<1x128xf32>
    %30 = arith.negf %29 : vector<1x128xf32>
    %31 = math.exp %30 : vector<1x128xf32>
    %cst_12 = arith.constant 1.000000e+00 : f32
    %32 = vector.broadcast %cst_12 : f32 to vector<1x128xf32>
    %33 = arith.addf %32, %31 : vector<1x128xf32>
    %34 = arith.divf %32, %33 : vector<1x128xf32>
    %35 = math.tanh %29 : vector<1x128xf32>
    %36 = vector.extract_strided_slice %34 {offsets = [0, 0], sizes = [1, 32], strides = [1, 1]} : vector<1x128xf32> to vector<1x32xf32>
    %37 = vector.extract_strided_slice %34 {offsets = [0, 32], sizes = [1, 32], strides = [1, 1]} : vector<1x128xf32> to vector<1x32xf32>
    %38 = vector.extract_strided_slice %35 {offsets = [0, 64], sizes = [1, 32], strides = [1, 1]} : vector<1x128xf32> to vector<1x32xf32>
    %39 = vector.extract_strided_slice %34 {offsets = [0, 96], sizes = [1, 32], strides = [1, 1]} : vector<1x128xf32> to vector<1x32xf32>
    %40 = arith.mulf %37, %24 : vector<1x32xf32>
    %41 = arith.mulf %36, %38 : vector<1x32xf32>
    %42 = arith.addf %40, %41 : vector<1x32xf32>
    %43 = math.tanh %42 : vector<1x32xf32>
    %44 = arith.mulf %39, %43 : vector<1x32xf32>
    %45 = vector.extract_strided_slice %5 {offsets = [2, 0], sizes = [1, 128], strides = [1, 1]} : vector<8x128xf32> to vector<1x128xf32>
    %cst_13 = arith.constant dense<0.000000e+00> : vector<1x128xf32>
    %46 = tpu.matmul %44, %6, %cst_13 {dimension_numbers = #tpu.dot_dimension_numbers<[1], [0], [0], [1], [0, 0, 1, 1], [], []>} : vector<1x32xf32>, vector<32x128xf32>, vector<1x128xf32> -> vector<1x128xf32>
    %47 = arith.addf %45, %46 : vector<1x128xf32>
    %48 = arith.negf %47 : vector<1x128xf32>
    %49 = math.exp %48 : vector<1x128xf32>
    %cst_14 = arith.constant 1.000000e+00 : f32
    %50 = vector.broadcast %cst_14 : f32 to vector<1x128xf32>
    %51 = arith.addf %50, %49 : vector<1x128xf32>
    %52 = arith.divf %50, %51 : vector<1x128xf32>
    %53 = math.tanh %47 : vector<1x128xf32>
    %54 = vector.extract_strided_slice %52 {offsets = [0, 0], sizes = [1, 32], strides = [1, 1]} : vector<1x128xf32> to vector<1x32xf32>
    %55 = vector.extract_strided_slice %52 {offsets = [0, 32], sizes = [1, 32], strides = [1, 1]} : vector<1x128xf32> to vector<1x32xf32>
    %56 = vector.extract_strided_slice %53 {offsets = [0, 64], sizes = [1, 32], strides = [1, 1]} : vector<1x128xf32> to vector<1x32xf32>
    %57 = vector.extract_strided_slice %52 {offsets = [0, 96], sizes = [1, 32], strides = [1, 1]} : vector<1x128xf32> to vector<1x32xf32>
    %58 = arith.mulf %55, %42 : vector<1x32xf32>
    %59 = arith.mulf %54, %56 : vector<1x32xf32>
    %60 = arith.addf %58, %59 : vector<1x32xf32>
    %61 = math.tanh %60 : vector<1x32xf32>
    %62 = arith.mulf %57, %61 : vector<1x32xf32>
    %63 = vector.extract_strided_slice %5 {offsets = [3, 0], sizes = [1, 128], strides = [1, 1]} : vector<8x128xf32> to vector<1x128xf32>
    %cst_15 = arith.constant dense<0.000000e+00> : vector<1x128xf32>
    %64 = tpu.matmul %62, %6, %cst_15 {dimension_numbers = #tpu.dot_dimension_numbers<[1], [0], [0], [1], [0, 0, 1, 1], [], []>} : vector<1x32xf32>, vector<32x128xf32>, vector<1x128xf32> -> vector<1x128xf32>
    %65 = arith.addf %63, %64 : vector<1x128xf32>
    %66 = arith.negf %65 : vector<1x128xf32>
    %67 = math.exp %66 : vector<1x128xf32>
    %cst_16 = arith.constant 1.000000e+00 : f32
    %68 = vector.broadcast %cst_16 : f32 to vector<1x128xf32>
    %69 = arith.addf %68, %67 : vector<1x128xf32>
    %70 = arith.divf %68, %69 : vector<1x128xf32>
    %71 = math.tanh %65 : vector<1x128xf32>
    %72 = vector.extract_strided_slice %70 {offsets = [0, 0], sizes = [1, 32], strides = [1, 1]} : vector<1x128xf32> to vector<1x32xf32>
    %73 = vector.extract_strided_slice %70 {offsets = [0, 32], sizes = [1, 32], strides = [1, 1]} : vector<1x128xf32> to vector<1x32xf32>
    %74 = vector.extract_strided_slice %71 {offsets = [0, 64], sizes = [1, 32], strides = [1, 1]} : vector<1x128xf32> to vector<1x32xf32>
    %75 = vector.extract_strided_slice %70 {offsets = [0, 96], sizes = [1, 32], strides = [1, 1]} : vector<1x128xf32> to vector<1x32xf32>
    %76 = arith.mulf %73, %60 : vector<1x32xf32>
    %77 = arith.mulf %72, %74 : vector<1x32xf32>
    %78 = arith.addf %76, %77 : vector<1x32xf32>
    %79 = math.tanh %78 : vector<1x32xf32>
    %80 = arith.mulf %75, %79 : vector<1x32xf32>
    %81 = vector.extract_strided_slice %5 {offsets = [4, 0], sizes = [1, 128], strides = [1, 1]} : vector<8x128xf32> to vector<1x128xf32>
    %cst_17 = arith.constant dense<0.000000e+00> : vector<1x128xf32>
    %82 = tpu.matmul %80, %6, %cst_17 {dimension_numbers = #tpu.dot_dimension_numbers<[1], [0], [0], [1], [0, 0, 1, 1], [], []>} : vector<1x32xf32>, vector<32x128xf32>, vector<1x128xf32> -> vector<1x128xf32>
    %83 = arith.addf %81, %82 : vector<1x128xf32>
    %84 = arith.negf %83 : vector<1x128xf32>
    %85 = math.exp %84 : vector<1x128xf32>
    %cst_18 = arith.constant 1.000000e+00 : f32
    %86 = vector.broadcast %cst_18 : f32 to vector<1x128xf32>
    %87 = arith.addf %86, %85 : vector<1x128xf32>
    %88 = arith.divf %86, %87 : vector<1x128xf32>
    %89 = math.tanh %83 : vector<1x128xf32>
    %90 = vector.extract_strided_slice %88 {offsets = [0, 0], sizes = [1, 32], strides = [1, 1]} : vector<1x128xf32> to vector<1x32xf32>
    %91 = vector.extract_strided_slice %88 {offsets = [0, 32], sizes = [1, 32], strides = [1, 1]} : vector<1x128xf32> to vector<1x32xf32>
    %92 = vector.extract_strided_slice %89 {offsets = [0, 64], sizes = [1, 32], strides = [1, 1]} : vector<1x128xf32> to vector<1x32xf32>
    %93 = vector.extract_strided_slice %88 {offsets = [0, 96], sizes = [1, 32], strides = [1, 1]} : vector<1x128xf32> to vector<1x32xf32>
    %94 = arith.mulf %91, %78 : vector<1x32xf32>
    %95 = arith.mulf %90, %92 : vector<1x32xf32>
    %96 = arith.addf %94, %95 : vector<1x32xf32>
    %97 = math.tanh %96 : vector<1x32xf32>
    %98 = arith.mulf %93, %97 : vector<1x32xf32>
    %99 = vector.extract_strided_slice %5 {offsets = [5, 0], sizes = [1, 128], strides = [1, 1]} : vector<8x128xf32> to vector<1x128xf32>
    %cst_19 = arith.constant dense<0.000000e+00> : vector<1x128xf32>
    %100 = tpu.matmul %98, %6, %cst_19 {dimension_numbers = #tpu.dot_dimension_numbers<[1], [0], [0], [1], [0, 0, 1, 1], [], []>} : vector<1x32xf32>, vector<32x128xf32>, vector<1x128xf32> -> vector<1x128xf32>
    %101 = arith.addf %99, %100 : vector<1x128xf32>
    %102 = arith.negf %101 : vector<1x128xf32>
    %103 = math.exp %102 : vector<1x128xf32>
    %cst_20 = arith.constant 1.000000e+00 : f32
    %104 = vector.broadcast %cst_20 : f32 to vector<1x128xf32>
    %105 = arith.addf %104, %103 : vector<1x128xf32>
    %106 = arith.divf %104, %105 : vector<1x128xf32>
    %107 = math.tanh %101 : vector<1x128xf32>
    %108 = vector.extract_strided_slice %106 {offsets = [0, 0], sizes = [1, 32], strides = [1, 1]} : vector<1x128xf32> to vector<1x32xf32>
    %109 = vector.extract_strided_slice %106 {offsets = [0, 32], sizes = [1, 32], strides = [1, 1]} : vector<1x128xf32> to vector<1x32xf32>
    %110 = vector.extract_strided_slice %107 {offsets = [0, 64], sizes = [1, 32], strides = [1, 1]} : vector<1x128xf32> to vector<1x32xf32>
    %111 = vector.extract_strided_slice %106 {offsets = [0, 96], sizes = [1, 32], strides = [1, 1]} : vector<1x128xf32> to vector<1x32xf32>
    %112 = arith.mulf %109, %96 : vector<1x32xf32>
    %113 = arith.mulf %108, %110 : vector<1x32xf32>
    %114 = arith.addf %112, %113 : vector<1x32xf32>
    %115 = math.tanh %114 : vector<1x32xf32>
    %116 = arith.mulf %111, %115 : vector<1x32xf32>
    %117 = vector.extract_strided_slice %5 {offsets = [6, 0], sizes = [1, 128], strides = [1, 1]} : vector<8x128xf32> to vector<1x128xf32>
    %cst_21 = arith.constant dense<0.000000e+00> : vector<1x128xf32>
    %118 = tpu.matmul %116, %6, %cst_21 {dimension_numbers = #tpu.dot_dimension_numbers<[1], [0], [0], [1], [0, 0, 1, 1], [], []>} : vector<1x32xf32>, vector<32x128xf32>, vector<1x128xf32> -> vector<1x128xf32>
    %119 = arith.addf %117, %118 : vector<1x128xf32>
    %120 = arith.negf %119 : vector<1x128xf32>
    %121 = math.exp %120 : vector<1x128xf32>
    %cst_22 = arith.constant 1.000000e+00 : f32
    %122 = vector.broadcast %cst_22 : f32 to vector<1x128xf32>
    %123 = arith.addf %122, %121 : vector<1x128xf32>
    %124 = arith.divf %122, %123 : vector<1x128xf32>
    %125 = math.tanh %119 : vector<1x128xf32>
    %126 = vector.extract_strided_slice %124 {offsets = [0, 0], sizes = [1, 32], strides = [1, 1]} : vector<1x128xf32> to vector<1x32xf32>
    %127 = vector.extract_strided_slice %124 {offsets = [0, 32], sizes = [1, 32], strides = [1, 1]} : vector<1x128xf32> to vector<1x32xf32>
    %128 = vector.extract_strided_slice %125 {offsets = [0, 64], sizes = [1, 32], strides = [1, 1]} : vector<1x128xf32> to vector<1x32xf32>
    %129 = vector.extract_strided_slice %124 {offsets = [0, 96], sizes = [1, 32], strides = [1, 1]} : vector<1x128xf32> to vector<1x32xf32>
    %130 = arith.mulf %127, %114 : vector<1x32xf32>
    %131 = arith.mulf %126, %128 : vector<1x32xf32>
    %132 = arith.addf %130, %131 : vector<1x32xf32>
    %133 = math.tanh %132 : vector<1x32xf32>
    %134 = arith.mulf %129, %133 : vector<1x32xf32>
    %135 = vector.extract_strided_slice %5 {offsets = [7, 0], sizes = [1, 128], strides = [1, 1]} : vector<8x128xf32> to vector<1x128xf32>
    %cst_23 = arith.constant dense<0.000000e+00> : vector<1x128xf32>
    %136 = tpu.matmul %134, %6, %cst_23 {dimension_numbers = #tpu.dot_dimension_numbers<[1], [0], [0], [1], [0, 0, 1, 1], [], []>} : vector<1x32xf32>, vector<32x128xf32>, vector<1x128xf32> -> vector<1x128xf32>
    %137 = arith.addf %135, %136 : vector<1x128xf32>
    %138 = arith.negf %137 : vector<1x128xf32>
    %139 = math.exp %138 : vector<1x128xf32>
    %cst_24 = arith.constant 1.000000e+00 : f32
    %140 = vector.broadcast %cst_24 : f32 to vector<1x128xf32>
    %141 = arith.addf %140, %139 : vector<1x128xf32>
    %142 = arith.divf %140, %141 : vector<1x128xf32>
    %143 = math.tanh %137 : vector<1x128xf32>
    %144 = vector.extract_strided_slice %142 {offsets = [0, 0], sizes = [1, 32], strides = [1, 1]} : vector<1x128xf32> to vector<1x32xf32>
    %145 = vector.extract_strided_slice %142 {offsets = [0, 32], sizes = [1, 32], strides = [1, 1]} : vector<1x128xf32> to vector<1x32xf32>
    %146 = vector.extract_strided_slice %143 {offsets = [0, 64], sizes = [1, 32], strides = [1, 1]} : vector<1x128xf32> to vector<1x32xf32>
    %147 = vector.extract_strided_slice %142 {offsets = [0, 96], sizes = [1, 32], strides = [1, 1]} : vector<1x128xf32> to vector<1x32xf32>
    %148 = arith.mulf %145, %132 : vector<1x32xf32>
    %149 = arith.mulf %144, %146 : vector<1x32xf32>
    %150 = arith.addf %148, %149 : vector<1x32xf32>
    %151 = math.tanh %150 : vector<1x32xf32>
    %152 = arith.mulf %147, %151 : vector<1x32xf32>
    %c0_25 = arith.constant 0 : index
    %c0_26 = arith.constant 0 : index
    %153 = vector.load %arg4[%c0_25, %c0_26] : memref<1x32xf32, #tpu.memory_space<vmem>>, vector<1x32xf32>
    tpu.vector_store %arg4[%c0_25, %c0_26], %152 {strides = array<i32>} : memref<1x32xf32, #tpu.memory_space<vmem>>, vector<1x32xf32>,
    return
  }
}

</mosaic_0001>

<llo_original>
// kernel: encoder_forward.1
$region0: #{encoder_forward.1}
  #allocation0 [shape = 'u32[]', space=smem, size = 0x4, offset = 0x4, fixed_abs, tag = 'smem constant byte address 0x4 - core index']
  #allocation1 [shape = 'u32[144,128]{1,0:T(1,128)}', space=vmem, size = 0x12000, scoped, tag = 'internal scratch']
  %s0 = inlined_call_operand.hbm [shape: f32[8,32], index: 0, kind: input, shape index: {}]
  %s1 = inlined_call_operand.hbm [shape: f32[32,128], index: 1, kind: input, shape index: {}]
  %s2 = inlined_call_operand.hbm [shape: f32[32,128], index: 2, kind: input, shape index: {}]
  %s3 = inlined_call_operand.vmem [shape: f32[1,128], index: 3, kind: input, shape index: {}]
  %s4 = inlined_call_operand.hbm [shape: f32[1,32], index: 4, kind: output, shape index: {}]
  %s5 = sld [smem:[#allocation0]]
  $region38: #{encoder_forward.1} parent=0
    _
  %s7 = ssub.s32 1, %s5
  %s8 = scalar_select 0, %s7, %s5
  $region1: #{encoder_forward.1} parent=0
    #allocation2 [shape = 'u8[4096]{0}', space=vmem, size = 0x1000, scoped, tag = 'input window, operand 0, single buffered']
    #allocation3 [shape = 's32[1]{0}', space=sflag, size = 0x4, scoped, tag = 'scoped memory for encoder_forward.1']
    #allocation4 [shape = 's32[1]{0}', space=sflag, size = 0x4, scoped, tag = 'scoped memory for encoder_forward.1']
    #allocation5 [shape = 'u8[16384]{0}', space=vmem, size = 0x4000, scoped, tag = 'input window, operand 1, single buffered']
    #allocation6 [shape = 's32[1]{0}', space=sflag, size = 0x4, scoped, tag = 'scoped memory for encoder_forward.1']
    #allocation7 [shape = 'u8[16384]{0}', space=vmem, size = 0x4000, scoped, tag = 'input window, operand 2, single buffered']
    #allocation8 [shape = 'u8[512]{0}', space=vmem, size = 0x400, scoped, tag = 'output window, operand 0, single buffered']
    %9 = vsyncpa [#allocation3], 0
    %10 = vsyncpa [#allocation6], 0
    %11 = vsyncpa [#allocation4], 0
    // Predicated region
    $region2: #{encoder_forward.1} parent=1 // pred_check
      _
    $region3: #{encoder_forward.1} parent=1 // pred_check_branch
      %13 = sbr.rel (0) target = $region5
    $region4: #{encoder_forward.1} parent=1 // pred_region
      %s15 = ssub.s32 128, 128
      %16 = vsyncadd [#allocation3], %s15
      %s18 = sshll.u32 [#allocation2], 4
      %s19 = int_to_ptr.vmem [resolvable:$true] %s18
      %21 = dma.hbm_to_vmem [thread:$0]  %s0, 128, %s19, [#allocation3]
    $region5: #{encoder_forward.1} parent=1 // pred_fallthru
      _
    // Predicated region
    $region6: #{encoder_forward.1} parent=1 // pred_check
      _
    $region7: #{encoder_forward.1} parent=1 // pred_check_branch
      %23 = sbr.rel (0) target = $region9
    $region8: #{encoder_forward.1} parent=1 // pred_region
      %s25 = ssub.s32 512, 512
      %26 = vsyncadd [#allocation6], %s25
      %s27 = sshll.u32 [#allocation5], 4
      %s28 = int_to_ptr.vmem [resolvable:$true] %s27
      %33 = dma.hbm_to_vmem [thread:$0]  %s1, 512, %s28, [#allocation6], 128, 128, 8
    $region9: #{encoder_forward.1} parent=1 // pred_fallthru
      _
    // Predicated region
    $region10: #{encoder_forward.1} parent=1 // pred_check
      _
    $region11: #{encoder_forward.1} parent=1 // pred_check_branch
      %35 = sbr.rel (0) target = $region13
    $region12: #{encoder_forward.1} parent=1 // pred_region
      %s37 = ssub.s32 512, 512
      %38 = vsyncadd [#allocation6], %s37
      %s39 = sshll.u32 [#allocation7], 4
      %s40 = int_to_ptr.vmem [resolvable:$true] %s39
      %45 = dma.hbm_to_vmem [thread:$0]  %s2, 512, %s40, [#allocation6], 128, 128, 8
    $region13: #{encoder_forward.1} parent=1 // pred_fallthru
      _
    // Predicated region
    $region14: #{encoder_forward.1} parent=1 // pred_check
      _
    $region15: #{encoder_forward.1} parent=1 // pred_check_branch
      %47 = sbr.rel (0) target = $region17
    $region16: #{encoder_forward.1} parent=1 // pred_region
      _
    $region17: #{encoder_forward.1} parent=1 // pred_fallthru
      _
    // Predicated region
    $region18: #{encoder_forward.1} parent=1 // pred_check
      _
    $region19: #{encoder_forward.1} parent=1 // pred_check_branch
      %49 = sbr.rel (0) target = $region21
    $region20: #{encoder_forward.1} parent=1 // pred_region
      %50 = dma.done [#allocation3], 128
    $region21: #{encoder_forward.1} parent=1 // pred_fallthru
      _
    // Predicated region
    $region22: #{encoder_forward.1} parent=1 // pred_check
      _
    $region23: #{encoder_forward.1} parent=1 // pred_check_branch
      %52 = sbr.rel (0) target = $region25
    $region24: #{encoder_forward.1} parent=1 // pred_region
      %53 = dma.done [#allocation6], 512
    $region25: #{encoder_forward.1} parent=1 // pred_fallthru
      _
    // Predicated region
    $region26: #{encoder_forward.1} parent=1 // pred_check
      _
    $region27: #{encoder_forward.1} parent=1 // pred_check_branch
      %55 = sbr.rel (0) target = $region29
    $region28: #{encoder_forward.1} parent=1 // pred_region
      %56 = dma.done [#allocation6], 512
    $region29: #{encoder_forward.1} parent=1 // pred_fallthru
      _
    %v57 = vld [vmem:[#allocation2] sm:$0xff]
    %v58 = vld [vmem:[#allocation5] sm:$0xff]
    %v59 = vld [vmem:[#allocation5 + $0x8] sm:$0xff]
    %v60 = vld [vmem:[#allocation5 + $0x10] sm:$0xff]
    %v61 = vld [vmem:[#allocation5 + $0x18] sm:$0xff]
    %v62 = vld [vmem:[%s3] sm:$0x1]
    %v64 = vlaneseq
    %v65 = vshrl.u32 %v64, 7
    %v66 = vsub.s32 0, %v65
    %v67 = vrot.slane %v62, %v66
    %vm69 = vcmask 261120
    %v71 = vsel %vm69, %v57, 0
    %73 = vmatprep.subr.mxu0 0.0
    %74 = vmatpush1.msra.mxu0 0.0
    %75 = vmatprep.subr.mxu0 0.0
    %76 = vmatpush1.msra.mxu0 0.0
    %77 = vmatprep.subr.mxu0 0.0
    %78 = vmatpush1.msra.mxu0 0.0
    %79 = vmatprep.subr.mxu0 0.0
    %80 = vmatpush1.msra.mxu0 0.0
    %81 = vmatprep.subr.mxu0 0.0
    %82 = vmatpush1.msra.mxu0 0.0
    %83 = vmatprep.subr.mxu0 0.0
    %84 = vmatpush1.msra.mxu0 0.0
    %85 = vmatprep.subr.mxu0 0.0
    %86 = vmatpush1.msra.mxu0 0.0
    %87 = vmatprep.subr.mxu0 0.0
    %88 = vmatpush1.msra.mxu0 0.0
    %89 = vmatprep.subr.mxu0 0.0
    %90 = vmatpush1.msra.mxu0 0.0
    %91 = vmatprep.subr.mxu0 0.0
    %92 = vmatpush1.msra.mxu0 0.0
    %93 = vmatprep.subr.mxu0 0.0
    %94 = vmatpush1.msra.mxu0 0.0
    %95 = vmatprep.subr.mxu0 0.0
    %96 = vmatpush1.msra.mxu0 0.0
    %97 = vmatprep.subr.mxu0 0.0
    %98 = vmatpush1.msra.mxu0 %v61
    %99 = vmatprep.subr.mxu0 0.0
    %100 = vmatpush1.msra.mxu0 %v60
    %101 = vmatprep.subr.mxu0 0.0
    %102 = vmatpush1.msra.mxu0 %v59
    %103 = vmatprep.subr.mxu0 0.0
    %104 = vmatpush1.msra.mxu0 %v58
    %105 = vmatprep.subr.mxu0 0.0
    %106 = vmatpush2.msra.mxu0 0.0
    %107 = vmatprep.subr.mxu0 0.0
    %108 = vmatpush2.msra.mxu0 0.0
    %109 = vmatprep.subr.mxu0 0.0
    %110 = vmatpush2.msra.mxu0 0.0
    %111 = vmatprep.subr.mxu0 0.0
    %112 = vmatpush2.msra.mxu0 0.0
    %113 = vmatprep.subr.mxu0 0.0
    %114 = vmatpush2.msra.mxu0 0.0
    %115 = vmatprep.subr.mxu0 0.0
    %116 = vmatpush2.msra.mxu0 0.0
    %117 = vmatprep.subr.mxu0 0.0
    %118 = vmatpush2.msra.mxu0 0.0
    %119 = vmatprep.subr.mxu0 0.0
    %120 = vmatpush2.msra.mxu0 0.0
    %121 = vmatprep.subr.mxu0 0.0
    %122 = vmatpush2.msra.mxu0 0.0
    %123 = vmatprep.subr.mxu0 0.0
    %124 = vmatpush2.msra.mxu0 0.0
    %125 = vmatprep.subr.mxu0 0.0
    %126 = vmatpush2.msra.mxu0 0.0
    %127 = vmatprep.subr.mxu0 0.0
    %128 = vmatpush2.msra.mxu0 0.0
    %129 = vmatprep.subr.mxu0 0.0
    %130 = vmatpush2.msra.mxu0 0.0
    %131 = vmatprep.subr.mxu0 0.0
    %132 = vmatpush2.msra.mxu0 0.0
    %133 = vmatprep.subr.mxu0 0.0
    %134 = vmatpush2.msra.mxu0 0.0
    %135 = vmatprep.subr.mxu0 0.0
    %136 = vmatpush2.msra.mxu0 0.0
    %137 = vmatprep.mubr.f32.mxu0 0.0
    %138 = vmatmul.mubr.f32.gmra.mxu0 %v71
    %v139 = vpop.f32.mrf.mxu0
    %v140 = vadd.f32 %v67, %v139
    %v141 = vpop.f32.mrf.mxu0
    %142 = vdwg.mxu0
    %v143 = vld [vmem:[#allocation7] sm:$0xff]
    %v144 = vld [vmem:[#allocation7 + $0x8] sm:$0xff]
    %v145 = vld [vmem:[#allocation7 + $0x10] sm:$0xff]
    %v146 = vld [vmem:[#allocation7 + $0x18] sm:$0xff]
    %v148 = vsel %vm69, 0.0, 0
    %150 = vmatprep.subr.mxu0 0.0
    %151 = vmatpush1.msra.mxu0 0.0
    %152 = vmatprep.subr.mxu0 0.0
    %153 = vmatpush1.msra.mxu0 0.0
    %154 = vmatprep.subr.mxu0 0.0
    %155 = vmatpush1.msra.mxu0 0.0
    %156 = vmatprep.subr.mxu0 0.0
    %157 = vmatpush1.msra.mxu0 0.0
    %158 = vmatprep.subr.mxu0 0.0
    %159 = vmatpush1.msra.mxu0 0.0
    %160 = vmatprep.subr.mxu0 0.0
    %161 = vmatpush1.msra.mxu0 0.0
    %162 = vmatprep.subr.mxu0 0.0
    %163 = vmatpush1.msra.mxu0 0.0
    %164 = vmatprep.subr.mxu0 0.0
    %165 = vmatpush1.msra.mxu0 0.0
    %166 = vmatprep.subr.mxu0 0.0
    %167 = vmatpush1.msra.mxu0 0.0
    %168 = vmatprep.subr.mxu0 0.0
    %169 = vmatpush1.msra.mxu0 0.0
    %170 = vmatprep.subr.mxu0 0.0
    %171 = vmatpush1.msra.mxu0 0.0
    %172 = vmatprep.subr.mxu0 0.0
    %173 = vmatpush1.msra.mxu0 0.0
    %174 = vmatprep.subr.mxu0 0.0
    %175 = vmatpush1.msra.mxu0 %v146
    %176 = vmatprep.subr.mxu0 0.0
    %177 = vmatpush1.msra.mxu0 %v145
    %178 = vmatprep.subr.mxu0 0.0
    %179 = vmatpush1.msra.mxu0 %v144
    %180 = vmatprep.subr.mxu0 0.0
    %181 = vmatpush1.msra.mxu0 %v143
    %182 = vmatprep.subr.mxu0 0.0
    %183 = vmatpush2.msra.mxu0 0.0
    %184 = vmatprep.subr.mxu0 0.0
    %185 = vmatpush2.msra.mxu0 0.0
    %186 = vmatprep.subr.mxu0 0.0
    %187 = vmatpush2.msra.mxu0 0.0
    %188 = vmatprep.subr.mxu0 0.0
    %189 = vmatpush2.msra.mxu0 0.0
    %190 = vmatprep.subr.mxu0 0.0
    %191 = vmatpush2.msra.mxu0 0.0
    %192 = vmatprep.subr.mxu0 0.0
    %193 = vmatpush2.msra.mxu0 0.0
    %194 = vmatprep.subr.mxu0 0.0
    %195 = vmatpush2.msra.mxu0 0.0
    %196 = vmatprep.subr.mxu0 0.0
    %197 = vmatpush2.msra.mxu0 0.0
    %198 = vmatprep.subr.mxu0 0.0
    %199 = vmatpush2.msra.mxu0 0.0
    %200 = vmatprep.subr.mxu0 0.0
    %201 = vmatpush2.msra.mxu0 0.0
    %202 = vmatprep.subr.mxu0 0.0
    %203 = vmatpush2.msra.mxu0 0.0
    %204 = vmatprep.subr.mxu0 0.0
    %205 = vmatpush2.msra.mxu0 0.0
    %206 = vmatprep.subr.mxu0 0.0
    %207 = vmatpush2.msra.mxu0 0.0
    %208 = vmatprep.subr.mxu0 0.0
    %209 = vmatpush2.msra.mxu0 0.0
    %210 = vmatprep.subr.mxu0 0.0
    %211 = vmatpush2.msra.mxu0 0.0
    %212 = vmatprep.subr.mxu0 0.0
    %213 = vmatpush2.msra.mxu0 0.0
    %214 = vmatprep.mubr.f32.mxu0 0.0
    %215 = vmatmul.mubr.f32.gmra.mxu0 %v148
    %v216 = vpop.f32.mrf.mxu0
    %v217 = vadd.f32 0.0, %v216
    %v218 = vpop.f32.mrf.mxu0
    %219 = vdwg.mxu0
    %v220 = vadd.f32 %v140, %v217
    %v221 = vxor.u32 %v220, 2147483648
    %v222 = vmul.f32 %v221, 1.442695
    %v223 = vpow.pop %v222
    %v224 = vadd.f32 %v223, 1.0
    %v225 = vrcp.pop %v224
    %v226 = vmul.f32 1.0, %v225
    %v227 = vtanh.pop %v220
    %v228 = vmul.f32 %v226, 0.0
    %230 = vrot.lane.b32.xlu0 %v227, 64
    %v231 = vpop.permute.xlu0 %230
    %v233 = vmul.f32 %v226, %v231
    %235 = vrot.lane.b32.xlu0 %v233, 32
    %v236 = vpop.permute.xlu0 %235
    %v238 = vadd.f32 %v228, %v236
    %v239 = vtanh.pop %v238
    %241 = vrot.lane.b32.xlu0 %v239, 64
    %v242 = vpop.permute.xlu0 %241
    %v244 = vmul.f32 %v226, %v242
    %246 = vrot.lane.b32.xlu0 %v244, 32
    %v247 = vpop.permute.xlu0 %246
    %v248 = vsel %vm69, %v247, 0
    %250 = vmatprep.subr.mxu0 0.0
    %251 = vmatpush1.msra.mxu0 0.0
    %252 = vmatprep.subr.mxu0 0.0
    %253 = vmatpush1.msra.mxu0 0.0
    %254 = vmatprep.subr.mxu0 0.0
    %255 = vmatpush1.msra.mxu0 0.0
    %256 = vmatprep.subr.mxu0 0.0
    %257 = vmatpush1.msra.mxu0 0.0
    %258 = vmatprep.subr.mxu0 0.0
    %259 = vmatpush1.msra.mxu0 0.0
    %260 = vmatprep.subr.mxu0 0.0
    %261 = vmatpush1.msra.mxu0 0.0
    %262 = vmatprep.subr.mxu0 0.0
    %263 = vmatpush1.msra.mxu0 0.0
    %264 = vmatprep.subr.mxu0 0.0
    %265 = vmatpush1.msra.mxu0 0.0
    %266 = vmatprep.subr.mxu0 0.0
    %267 = vmatpush1.msra.mxu0 0.0
    %268 = vmatprep.subr.mxu0 0.0
    %269 = vmatpush1.msra.mxu0 0.0
    %270 = vmatprep.subr.mxu0 0.0
    %271 = vmatpush1.msra.mxu0 0.0
    %272 = vmatprep.subr.mxu0 0.0
    %273 = vmatpush1.msra.mxu0 0.0
    %274 = vmatprep.subr.mxu0 0.0
    %275 = vmatpush1.msra.mxu0 %v146
    %276 = vmatprep.subr.mxu0 0.0
    %277 = vmatpush1.msra.mxu0 %v145
    %278 = vmatprep.subr.mxu0 0.0
    %279 = vmatpush1.msra.mxu0 %v144
    %280 = vmatprep.subr.mxu0 0.0
    %281 = vmatpush1.msra.mxu0 %v143
    %282 = vmatprep.subr.mxu0 0.0
    %283 = vmatpush2.msra.mxu0 0.0
    %284 = vmatprep.subr.mxu0 0.0
    %285 = vmatpush2.msra.mxu0 0.0
    %286 = vmatprep.subr.mxu0 0.0
    %287 = vmatpush2.msra.mxu0 0.0
    %288 = vmatprep.subr.mxu0 0.0
    %289 = vmatpush2.msra.mxu0 0.0
    %290 = vmatprep.subr.mxu0 0.0
    %291 = vmatpush2.msra.mxu0 0.0
    %292 = vmatprep.subr.mxu0 0.0
    %293 = vmatpush2.msra.mxu0 0.0
    %294 = vmatprep.subr.mxu0 0.0
    %295 = vmatpush2.msra.mxu0 0.0
    %296 = vmatprep.subr.mxu0 0.0
    %297 = vmatpush2.msra.mxu0 0.0
    %298 = vmatprep.subr.mxu0 0.0
    %299 = vmatpush2.msra.mxu0 0.0
    %300 = vmatprep.subr.mxu0 0.0
    %301 = vmatpush2.msra.mxu0 0.0
    %302 = vmatprep.subr.mxu0 0.0
    %303 = vmatpush2.msra.mxu0 0.0
    %304 = vmatprep.subr.mxu0 0.0
    %305 = vmatpush2.msra.mxu0 0.0
    %306 = vmatprep.subr.mxu0 0.0
    %307 = vmatpush2.msra.mxu0 0.0
    %308 = vmatprep.subr.mxu0 0.0
    %309 = vmatpush2.msra.mxu0 0.0
    %310 = vmatprep.subr.mxu0 0.0
    %311 = vmatpush2.msra.mxu0 0.0
    %312 = vmatprep.subr.mxu0 0.0
    %313 = vmatpush2.msra.mxu0 0.0
    %314 = vmatprep.mubr.f32.mxu0 0.0
    %315 = vmatmul.mubr.f32.gmra.mxu0 %v248
    %v316 = vpop.f32.mrf.mxu0
    %v317 = vadd.f32 0.0, %v316
    %v318 = vpop.f32.mrf.mxu0
    %319 = vdwg.mxu0
    %v321 = vrot.slane %v317, 7
    %v323 = vadd.f32 %v140, %v321
    %v324 = vxor.u32 %v323, 2147483648
    %v325 = vmul.f32 %v324, 1.442695
    %v326 = vpow.pop %v325
    %v327 = vadd.f32 %v326, 1.0
    %v328 = vrcp.pop %v327
    %v329 = vmul.f32 1.0, %v328
    %v330 = vtanh.pop %v323
    %v332 = vrot.slane %v238, 7
    %v334 = vmul.f32 %v329, %v332
    %336 = vrot.lane.b32.xlu0 %v330, 64
    %v337 = vpop.permute.xlu0 %336
    %v339 = vmul.f32 %v329, %v337
    %341 = vrot.lane.b32.xlu0 %v339, 32
    %v342 = vpop.permute.xlu0 %341
    %v344 = vadd.f32 %v334, %v342
    %v345 = vtanh.pop %v344
    %347 = vrot.lane.b32.xlu0 %v345, 64
    %v348 = vpop.permute.xlu0 %347
    %v350 = vmul.f32 %v329, %v348
    %v352 = vrot.slane %v350, 1
    %353 = vrot.lane.b32.xlu0 %v352, 32
    %v354 = vpop.permute.xlu0 %353
    %v355 = vsel %vm69, %v354, 0
    %357 = vmatprep.subr.mxu0 0.0
    %358 = vmatpush1.msra.mxu0 0.0
    %359 = vmatprep.subr.mxu0 0.0
    %360 = vmatpush1.msra.mxu0 0.0
    %361 = vmatprep.subr.mxu0 0.0
    %362 = vmatpush1.msra.mxu0 0.0
    %363 = vmatprep.subr.mxu0 0.0
    %364 = vmatpush1.msra.mxu0 0.0
    %365 = vmatprep.subr.mxu0 0.0
    %366 = vmatpush1.msra.mxu0 0.0
    %367 = vmatprep.subr.mxu0 0.0
    %368 = vmatpush1.msra.mxu0 0.0
    %369 = vmatprep.subr.mxu0 0.0
    %370 = vmatpush1.msra.mxu0 0.0
    %371 = vmatprep.subr.mxu0 0.0
    %372 = vmatpush1.msra.mxu0 0.0
    %373 = vmatprep.subr.mxu0 0.0
    %374 = vmatpush1.msra.mxu0 0.0
    %375 = vmatprep.subr.mxu0 0.0
    %376 = vmatpush1.msra.mxu0 0.0
    %377 = vmatprep.subr.mxu0 0.0
    %378 = vmatpush1.msra.mxu0 0.0
    %379 = vmatprep.subr.mxu0 0.0
    %380 = vmatpush1.msra.mxu0 0.0
    %381 = vmatprep.subr.mxu0 0.0
    %382 = vmatpush1.msra.mxu0 %v146
    %383 = vmatprep.subr.mxu0 0.0
    %384 = vmatpush1.msra.mxu0 %v145
    %385 = vmatprep.subr.mxu0 0.0
    %386 = vmatpush1.msra.mxu0 %v144
    %387 = vmatprep.subr.mxu0 0.0
    %388 = vmatpush1.msra.mxu0 %v143
    %389 = vmatprep.subr.mxu0 0.0
    %390 = vmatpush2.msra.mxu0 0.0
    %391 = vmatprep.subr.mxu0 0.0
    %392 = vmatpush2.msra.mxu0 0.0
    %393 = vmatprep.subr.mxu0 0.0
    %394 = vmatpush2.msra.mxu0 0.0
    %395 = vmatprep.subr.mxu0 0.0
    %396 = vmatpush2.msra.mxu0 0.0
    %397 = vmatprep.subr.mxu0 0.0
    %398 = vmatpush2.msra.mxu0 0.0
    %399 = vmatprep.subr.mxu0 0.0
    %400 = vmatpush2.msra.mxu0 0.0
    %401 = vmatprep.subr.mxu0 0.0
    %402 = vmatpush2.msra.mxu0 0.0
    %403 = vmatprep.subr.mxu0 0.0
    %404 = vmatpush2.msra.mxu0 0.0
    %405 = vmatprep.subr.mxu0 0.0
    %406 = vmatpush2.msra.mxu0 0.0
    %407 = vmatprep.subr.mxu0 0.0
    %408 = vmatpush2.msra.mxu0 0.0
    %409 = vmatprep.subr.mxu0 0.0
    %410 = vmatpush2.msra.mxu0 0.0
    %411 = vmatprep.subr.mxu0 0.0
    %412 = vmatpush2.msra.mxu0 0.0
    %413 = vmatprep.subr.mxu0 0.0
    %414 = vmatpush2.msra.mxu0 0.0
    %415 = vmatprep.subr.mxu0 0.0
    %416 = vmatpush2.msra.mxu0 0.0
    %417 = vmatprep.subr.mxu0 0.0
    %418 = vmatpush2.msra.mxu0 0.0
    %419 = vmatprep.subr.mxu0 0.0
    %420 = vmatpush2.msra.mxu0 0.0
    %421 = vmatprep.mubr.f32.mxu0 0.0
    %422 = vmatmul.mubr.f32.gmra.mxu0 %v355
    %v423 = vpop.f32.mrf.mxu0
    %v424 = vadd.f32 0.0, %v423
    %v425 = vpop.f32.mrf.mxu0
    %426 = vdwg.mxu0
    %v428 = vrot.slane %v424, 6
    %v430 = vadd.f32 %v140, %v428
    %v431 = vxor.u32 %v430, 2147483648
    %v432 = vmul.f32 %v431, 1.442695
    %v433 = vpow.pop %v432
    %v434 = vadd.f32 %v433, 1.0
    %v435 = vrcp.pop %v434
    %v436 = vmul.f32 1.0, %v435
    %v437 = vtanh.pop %v430
    %v439 = vrot.slane %v344, 7
    %v441 = vmul.f32 %v436, %v439
    %443 = vrot.lane.b32.xlu0 %v437, 64
    %v444 = vpop.permute.xlu0 %443
    %v446 = vmul.f32 %v436, %v444
    %448 = vrot.lane.b32.xlu0 %v446, 32
    %v449 = vpop.permute.xlu0 %448
    %v451 = vadd.f32 %v441, %v449
    %v452 = vtanh.pop %v451
    %454 = vrot.lane.b32.xlu0 %v452, 64
    %v455 = vpop.permute.xlu0 %454
    %v457 = vmul.f32 %v436, %v455
    %v459 = vrot.slane %v457, 2
    %460 = vrot.lane.b32.xlu0 %v459, 32
    %v461 = vpop.permute.xlu0 %460
    %v462 = vsel %vm69, %v461, 0
    %464 = vmatprep.subr.mxu0 0.0
    %465 = vmatpush1.msra.mxu0 0.0
    %466 = vmatprep.subr.mxu0 0.0
    %467 = vmatpush1.msra.mxu0 0.0
    %468 = vmatprep.subr.mxu0 0.0
    %469 = vmatpush1.msra.mxu0 0.0
    %470 = vmatprep.subr.mxu0 0.0
    %471 = vmatpush1.msra.mxu0 0.0
    %472 = vmatprep.subr.mxu0 0.0
    %473 = vmatpush1.msra.mxu0 0.0
    %474 = vmatprep.subr.mxu0 0.0
    %475 = vmatpush1.msra.mxu0 0.0
    %476 = vmatprep.subr.mxu0 0.0
    %477 = vmatpush1.msra.mxu0 0.0
    %478 = vmatprep.subr.mxu0 0.0
    %479 = vmatpush1.msra.mxu0 0.0
    %480 = vmatprep.subr.mxu0 0.0
    %481 = vmatpush1.msra.mxu0 0.0
    %482 = vmatprep.subr.mxu0 0.0
    %483 = vmatpush1.msra.mxu0 0.0
    %484 = vmatprep.subr.mxu0 0.0
    %485 = vmatpush1.msra.mxu0 0.0
    %486 = vmatprep.subr.mxu0 0.0
    %487 = vmatpush1.msra.mxu0 0.0
    %488 = vmatprep.subr.mxu0 0.0
    %489 = vmatpush1.msra.mxu0 %v146
    %490 = vmatprep.subr.mxu0 0.0
    %491 = vmatpush1.msra.mxu0 %v145
    %492 = vmatprep.subr.mxu0 0.0
    %493 = vmatpush1.msra.mxu0 %v144
    %494 = vmatprep.subr.mxu0 0.0
    %495 = vmatpush1.msra.mxu0 %v143
    %496 = vmatprep.subr.mxu0 0.0
    %497 = vmatpush2.msra.mxu0 0.0
    %498 = vmatprep.subr.mxu0 0.0
    %499 = vmatpush2.msra.mxu0 0.0
    %500 = vmatprep.subr.mxu0 0.0
    %501 = vmatpush2.msra.mxu0 0.0
    %502 = vmatprep.subr.mxu0 0.0
    %503 = vmatpush2.msra.mxu0 0.0
    %504 = vmatprep.subr.mxu0 0.0
    %505 = vmatpush2.msra.mxu0 0.0
    %506 = vmatprep.subr.mxu0 0.0
    %507 = vmatpush2.msra.mxu0 0.0
    %508 = vmatprep.subr.mxu0 0.0
    %509 = vmatpush2.msra.mxu0 0.0
    %510 = vmatprep.subr.mxu0 0.0
    %511 = vmatpush2.msra.mxu0 0.0
    %512 = vmatprep.subr.mxu0 0.0
    %513 = vmatpush2.msra.mxu0 0.0
    %514 = vmatprep.subr.mxu0 0.0
    %515 = vmatpush2.msra.mxu0 0.0
    %516 = vmatprep.subr.mxu0 0.0
    %517 = vmatpush2.msra.mxu0 0.0
    %518 = vmatprep.subr.mxu0 0.0
    %519 = vmatpush2.msra.mxu0 0.0
    %520 = vmatprep.subr.mxu0 0.0
    %521 = vmatpush2.msra.mxu0 0.0
    %522 = vmatprep.subr.mxu0 0.0
    %523 = vmatpush2.msra.mxu0 0.0
    %524 = vmatprep.subr.mxu0 0.0
    %525 = vmatpush2.msra.mxu0 0.0
    %526 = vmatprep.subr.mxu0 0.0
    %527 = vmatpush2.msra.mxu0 0.0
    %528 = vmatprep.mubr.f32.mxu0 0.0
    %529 = vmatmul.mubr.f32.gmra.mxu0 %v462
    %v530 = vpop.f32.mrf.mxu0
    %v531 = vadd.f32 0.0, %v530
    %v532 = vpop.f32.mrf.mxu0
    %533 = vdwg.mxu0
    %v535 = vrot.slane %v531, 5
    %v537 = vadd.f32 %v140, %v535
    %v538 = vxor.u32 %v537, 2147483648
    %v539 = vmul.f32 %v538, 1.442695
    %v540 = vpow.pop %v539
    %v541 = vadd.f32 %v540, 1.0
    %v542 = vrcp.pop %v541
    %v543 = vmul.f32 1.0, %v542
    %v544 = vtanh.pop %v537
    %v546 = vrot.slane %v451, 7
    %v548 = vmul.f32 %v543, %v546
    %550 = vrot.lane.b32.xlu0 %v544, 64
    %v551 = vpop.permute.xlu0 %550
    %v553 = vmul.f32 %v543, %v551
    %555 = vrot.lane.b32.xlu0 %v553, 32
    %v556 = vpop.permute.xlu0 %555
    %v558 = vadd.f32 %v548, %v556
    %v559 = vtanh.pop %v558
    %561 = vrot.lane.b32.xlu0 %v559, 64
    %v562 = vpop.permute.xlu0 %561
    %v564 = vmul.f32 %v543, %v562
    %v566 = vrot.slane %v564, 3
    %567 = vrot.lane.b32.xlu0 %v566, 32
    %v568 = vpop.permute.xlu0 %567
    %v569 = vsel %vm69, %v568, 0
    %571 = vmatprep.subr.mxu0 0.0
    %572 = vmatpush1.msra.mxu0 0.0
    %573 = vmatprep.subr.mxu0 0.0
    %574 = vmatpush1.msra.mxu0 0.0
    %575 = vmatprep.subr.mxu0 0.0
    %576 = vmatpush1.msra.mxu0 0.0
    %577 = vmatprep.subr.mxu0 0.0
    %578 = vmatpush1.msra.mxu0 0.0
    %579 = vmatprep.subr.mxu0 0.0
    %580 = vmatpush1.msra.mxu0 0.0
    %581 = vmatprep.subr.mxu0 0.0
    %582 = vmatpush1.msra.mxu0 0.0
    %583 = vmatprep.subr.mxu0 0.0
    %584 = vmatpush1.msra.mxu0 0.0
    %585 = vmatprep.subr.mxu0 0.0
    %586 = vmatpush1.msra.mxu0 0.0
    %587 = vmatprep.subr.mxu0 0.0
    %588 = vmatpush1.msra.mxu0 0.0
    %589 = vmatprep.subr.mxu0 0.0
    %590 = vmatpush1.msra.mxu0 0.0
    %591 = vmatprep.subr.mxu0 0.0
    %592 = vmatpush1.msra.mxu0 0.0
    %593 = vmatprep.subr.mxu0 0.0
    %594 = vmatpush1.msra.mxu0 0.0
    %595 = vmatprep.subr.mxu0 0.0
    %596 = vmatpush1.msra.mxu0 %v146
    %597 = vmatprep.subr.mxu0 0.0
    %598 = vmatpush1.msra.mxu0 %v145
    %599 = vmatprep.subr.mxu0 0.0
    %600 = vmatpush1.msra.mxu0 %v144
    %601 = vmatprep.subr.mxu0 0.0
    %602 = vmatpush1.msra.mxu0 %v143
    %603 = vmatprep.subr.mxu0 0.0
    %604 = vmatpush2.msra.mxu0 0.0
    %605 = vmatprep.subr.mxu0 0.0
    %606 = vmatpush2.msra.mxu0 0.0
    %607 = vmatprep.subr.mxu0 0.0
    %608 = vmatpush2.msra.mxu0 0.0
    %609 = vmatprep.subr.mxu0 0.0
    %610 = vmatpush2.msra.mxu0 0.0
    %611 = vmatprep.subr.mxu0 0.0
    %612 = vmatpush2.msra.mxu0 0.0
    %613 = vmatprep.subr.mxu0 0.0
    %614 = vmatpush2.msra.mxu0 0.0
    %615 = vmatprep.subr.mxu0 0.0
    %616 = vmatpush2.msra.mxu0 0.0
    %617 = vmatprep.subr.mxu0 0.0
    %618 = vmatpush2.msra.mxu0 0.0
    %619 = vmatprep.subr.mxu0 0.0
    %620 = vmatpush2.msra.mxu0 0.0
    %621 = vmatprep.subr.mxu0 0.0
    %622 = vmatpush2.msra.mxu0 0.0
    %623 = vmatprep.subr.mxu0 0.0
    %624 = vmatpush2.msra.mxu0 0.0
    %625 = vmatprep.subr.mxu0 0.0
    %626 = vmatpush2.msra.mxu0 0.0
    %627 = vmatprep.subr.mxu0 0.0
    %628 = vmatpush2.msra.mxu0 0.0
    %629 = vmatprep.subr.mxu0 0.0
    %630 = vmatpush2.msra.mxu0 0.0
    %631 = vmatprep.subr.mxu0 0.0
    %632 = vmatpush2.msra.mxu0 0.0
    %633 = vmatprep.subr.mxu0 0.0
    %634 = vmatpush2.msra.mxu0 0.0
    %635 = vmatprep.mubr.f32.mxu0 0.0
    %636 = vmatmul.mubr.f32.gmra.mxu0 %v569
    %v637 = vpop.f32.mrf.mxu0
    %v638 = vadd.f32 0.0, %v637
    %v639 = vpop.f32.mrf.mxu0
    %640 = vdwg.mxu0
    %v642 = vrot.slane %v638, 4
    %v644 = vadd.f32 %v140, %v642
    %v645 = vxor.u32 %v644, 2147483648
    %v646 = vmul.f32 %v645, 1.442695
    %v647 = vpow.pop %v646
    %v648 = vadd.f32 %v647, 1.0
    %v649 = vrcp.pop %v648
    %v650 = vmul.f32 1.0, %v649
    %v651 = vtanh.pop %v644
    %v653 = vrot.slane %v558, 7
    %v655 = vmul.f32 %v650, %v653
    %657 = vrot.lane.b32.xlu0 %v651, 64
    %v658 = vpop.permute.xlu0 %657
    %v660 = vmul.f32 %v650, %v658
    %662 = vrot.lane.b32.xlu0 %v660, 32
    %v663 = vpop.permute.xlu0 %662
    %v665 = vadd.f32 %v655, %v663
    %v666 = vtanh.pop %v665
    %668 = vrot.lane.b32.xlu0 %v666, 64
    %v669 = vpop.permute.xlu0 %668
    %v671 = vmul.f32 %v650, %v669
    %v673 = vrot.slane %v671, 4
    %674 = vrot.lane.b32.xlu0 %v673, 32
    %v675 = vpop.permute.xlu0 %674
    %v676 = vsel %vm69, %v675, 0
    %678 = vmatprep.subr.mxu0 0.0
    %679 = vmatpush1.msra.mxu0 0.0
    %680 = vmatprep.subr.mxu0 0.0
    %681 = vmatpush1.msra.mxu0 0.0
    %682 = vmatprep.subr.mxu0 0.0
    %683 = vmatpush1.msra.mxu0 0.0
    %684 = vmatprep.subr.mxu0 0.0
    %685 = vmatpush1.msra.mxu0 0.0
    %686 = vmatprep.subr.mxu0 0.0
    %687 = vmatpush1.msra.mxu0 0.0
    %688 = vmatprep.subr.mxu0 0.0
    %689 = vmatpush1.msra.mxu0 0.0
    %690 = vmatprep.subr.mxu0 0.0
    %691 = vmatpush1.msra.mxu0 0.0
    %692 = vmatprep.subr.mxu0 0.0
    %693 = vmatpush1.msra.mxu0 0.0
    %694 = vmatprep.subr.mxu0 0.0
    %695 = vmatpush1.msra.mxu0 0.0
    %696 = vmatprep.subr.mxu0 0.0
    %697 = vmatpush1.msra.mxu0 0.0
    %698 = vmatprep.subr.mxu0 0.0
    %699 = vmatpush1.msra.mxu0 0.0
    %700 = vmatprep.subr.mxu0 0.0
    %701 = vmatpush1.msra.mxu0 0.0
    %702 = vmatprep.subr.mxu0 0.0
    %703 = vmatpush1.msra.mxu0 %v146
    %704 = vmatprep.subr.mxu0 0.0
    %705 = vmatpush1.msra.mxu0 %v145
    %706 = vmatprep.subr.mxu0 0.0
    %707 = vmatpush1.msra.mxu0 %v144
    %708 = vmatprep.subr.mxu0 0.0
    %709 = vmatpush1.msra.mxu0 %v143
    %710 = vmatprep.subr.mxu0 0.0
    %711 = vmatpush2.msra.mxu0 0.0
    %712 = vmatprep.subr.mxu0 0.0
    %713 = vmatpush2.msra.mxu0 0.0
    %714 = vmatprep.subr.mxu0 0.0
    %715 = vmatpush2.msra.mxu0 0.0
    %716 = vmatprep.subr.mxu0 0.0
    %717 = vmatpush2.msra.mxu0 0.0
    %718 = vmatprep.subr.mxu0 0.0
    %719 = vmatpush2.msra.mxu0 0.0
    %720 = vmatprep.subr.mxu0 0.0
    %721 = vmatpush2.msra.mxu0 0.0
    %722 = vmatprep.subr.mxu0 0.0
    %723 = vmatpush2.msra.mxu0 0.0
    %724 = vmatprep.subr.mxu0 0.0
    %725 = vmatpush2.msra.mxu0 0.0
    %726 = vmatprep.subr.mxu0 0.0
    %727 = vmatpush2.msra.mxu0 0.0
    %728 = vmatprep.subr.mxu0 0.0
    %729 = vmatpush2.msra.mxu0 0.0
    %730 = vmatprep.subr.mxu0 0.0
    %731 = vmatpush2.msra.mxu0 0.0
    %732 = vmatprep.subr.mxu0 0.0
    %733 = vmatpush2.msra.mxu0 0.0
    %734 = vmatprep.subr.mxu0 0.0
    %735 = vmatpush2.msra.mxu0 0.0
    %736 = vmatprep.subr.mxu0 0.0
    %737 = vmatpush2.msra.mxu0 0.0
    %738 = vmatprep.subr.mxu0 0.0
    %739 = vmatpush2.msra.mxu0 0.0
    %740 = vmatprep.subr.mxu0 0.0
    %741 = vmatpush2.msra.mxu0 0.0
    %742 = vmatprep.mubr.f32.mxu0 0.0
    %743 = vmatmul.mubr.f32.gmra.mxu0 %v676
    %v744 = vpop.f32.mrf.mxu0
    %v745 = vadd.f32 0.0, %v744
    %v746 = vpop.f32.mrf.mxu0
    %747 = vdwg.mxu0
    %v749 = vrot.slane %v745, 3
    %v751 = vadd.f32 %v140, %v749
    %v752 = vxor.u32 %v751, 2147483648
    %v753 = vmul.f32 %v752, 1.442695
    %v754 = vpow.pop %v753
    %v755 = vadd.f32 %v754, 1.0
    %v756 = vrcp.pop %v755
    %v757 = vmul.f32 1.0, %v756
    %v758 = vtanh.pop %v751
    %v760 = vrot.slane %v665, 7
    %v762 = vmul.f32 %v757, %v760
    %764 = vrot.lane.b32.xlu0 %v758, 64
    %v765 = vpop.permute.xlu0 %764
    %v767 = vmul.f32 %v757, %v765
    %769 = vrot.lane.b32.xlu0 %v767, 32
    %v770 = vpop.permute.xlu0 %769
    %v772 = vadd.f32 %v762, %v770
    %v773 = vtanh.pop %v772
    %775 = vrot.lane.b32.xlu0 %v773, 64
    %v776 = vpop.permute.xlu0 %775
    %v778 = vmul.f32 %v757, %v776
    %v780 = vrot.slane %v778, 5
    %781 = vrot.lane.b32.xlu0 %v780, 32
    %v782 = vpop.permute.xlu0 %781
    %v783 = vsel %vm69, %v782, 0
    %785 = vmatprep.subr.mxu0 0.0
    %786 = vmatpush1.msra.mxu0 0.0
    %787 = vmatprep.subr.mxu0 0.0
    %788 = vmatpush1.msra.mxu0 0.0
    %789 = vmatprep.subr.mxu0 0.0
    %790 = vmatpush1.msra.mxu0 0.0
    %791 = vmatprep.subr.mxu0 0.0
    %792 = vmatpush1.msra.mxu0 0.0
    %793 = vmatprep.subr.mxu0 0.0
    %794 = vmatpush1.msra.mxu0 0.0
    %795 = vmatprep.subr.mxu0 0.0
    %796 = vmatpush1.msra.mxu0 0.0
    %797 = vmatprep.subr.mxu0 0.0
    %798 = vmatpush1.msra.mxu0 0.0
    %799 = vmatprep.subr.mxu0 0.0
    %800 = vmatpush1.msra.mxu0 0.0
    %801 = vmatprep.subr.mxu0 0.0
    %802 = vmatpush1.msra.mxu0 0.0
    %803 = vmatprep.subr.mxu0 0.0
    %804 = vmatpush1.msra.mxu0 0.0
    %805 = vmatprep.subr.mxu0 0.0
    %806 = vmatpush1.msra.mxu0 0.0
    %807 = vmatprep.subr.mxu0 0.0
    %808 = vmatpush1.msra.mxu0 0.0
    %809 = vmatprep.subr.mxu0 0.0
    %810 = vmatpush1.msra.mxu0 %v146
    %811 = vmatprep.subr.mxu0 0.0
    %812 = vmatpush1.msra.mxu0 %v145
    %813 = vmatprep.subr.mxu0 0.0
    %814 = vmatpush1.msra.mxu0 %v144
    %815 = vmatprep.subr.mxu0 0.0
    %816 = vmatpush1.msra.mxu0 %v143
    %817 = vmatprep.subr.mxu0 0.0
    %818 = vmatpush2.msra.mxu0 0.0
    %819 = vmatprep.subr.mxu0 0.0
    %820 = vmatpush2.msra.mxu0 0.0
    %821 = vmatprep.subr.mxu0 0.0
    %822 = vmatpush2.msra.mxu0 0.0
    %823 = vmatprep.subr.mxu0 0.0
    %824 = vmatpush2.msra.mxu0 0.0
    %825 = vmatprep.subr.mxu0 0.0
    %826 = vmatpush2.msra.mxu0 0.0
    %827 = vmatprep.subr.mxu0 0.0
    %828 = vmatpush2.msra.mxu0 0.0
    %829 = vmatprep.subr.mxu0 0.0
    %830 = vmatpush2.msra.mxu0 0.0
    %831 = vmatprep.subr.mxu0 0.0
    %832 = vmatpush2.msra.mxu0 0.0
    %833 = vmatprep.subr.mxu0 0.0
    %834 = vmatpush2.msra.mxu0 0.0
    %835 = vmatprep.subr.mxu0 0.0
    %836 = vmatpush2.msra.mxu0 0.0
    %837 = vmatprep.subr.mxu0 0.0
    %838 = vmatpush2.msra.mxu0 0.0
    %839 = vmatprep.subr.mxu0 0.0
    %840 = vmatpush2.msra.mxu0 0.0
    %841 = vmatprep.subr.mxu0 0.0
    %842 = vmatpush2.msra.mxu0 0.0
    %843 = vmatprep.subr.mxu0 0.0
    %844 = vmatpush2.msra.mxu0 0.0
    %845 = vmatprep.subr.mxu0 0.0
    %846 = vmatpush2.msra.mxu0 0.0
    %847 = vmatprep.subr.mxu0 0.0
    %848 = vmatpush2.msra.mxu0 0.0
    %849 = vmatprep.mubr.f32.mxu0 0.0
    %850 = vmatmul.mubr.f32.gmra.mxu0 %v783
    %v851 = vpop.f32.mrf.mxu0
    %v852 = vadd.f32 0.0, %v851
    %v853 = vpop.f32.mrf.mxu0
    %854 = vdwg.mxu0
    %v856 = vrot.slane %v852, 2
    %v858 = vadd.f32 %v140, %v856
    %v859 = vxor.u32 %v858, 2147483648
    %v860 = vmul.f32 %v859, 1.442695
    %v861 = vpow.pop %v860
    %v862 = vadd.f32 %v861, 1.0
    %v863 = vrcp.pop %v862
    %v864 = vmul.f32 1.0, %v863
    %v865 = vtanh.pop %v858
    %v867 = vrot.slane %v772, 7
    %v869 = vmul.f32 %v864, %v867
    %871 = vrot.lane.b32.xlu0 %v865, 64
    %v872 = vpop.permute.xlu0 %871
    %v874 = vmul.f32 %v864, %v872
    %876 = vrot.lane.b32.xlu0 %v874, 32
    %v877 = vpop.permute.xlu0 %876
    %v879 = vadd.f32 %v869, %v877
    %v880 = vtanh.pop %v879
    %882 = vrot.lane.b32.xlu0 %v880, 64
    %v883 = vpop.permute.xlu0 %882
    %v885 = vmul.f32 %v864, %v883
    %v887 = vrot.slane %v885, 6
    %888 = vrot.lane.b32.xlu0 %v887, 32
    %v889 = vpop.permute.xlu0 %888
    %v890 = vsel %vm69, %v889, 0
    %892 = vmatprep.subr.mxu0 0.0
    %893 = vmatpush1.msra.mxu0 0.0
    %894 = vmatprep.subr.mxu0 0.0
    %895 = vmatpush1.msra.mxu0 0.0
    %896 = vmatprep.subr.mxu0 0.0
    %897 = vmatpush1.msra.mxu0 0.0
    %898 = vmatprep.subr.mxu0 0.0
    %899 = vmatpush1.msra.mxu0 0.0
    %900 = vmatprep.subr.mxu0 0.0
    %901 = vmatpush1.msra.mxu0 0.0
    %902 = vmatprep.subr.mxu0 0.0
    %903 = vmatpush1.msra.mxu0 0.0
    %904 = vmatprep.subr.mxu0 0.0
    %905 = vmatpush1.msra.mxu0 0.0
    %906 = vmatprep.subr.mxu0 0.0
    %907 = vmatpush1.msra.mxu0 0.0
    %908 = vmatprep.subr.mxu0 0.0
    %909 = vmatpush1.msra.mxu0 0.0
    %910 = vmatprep.subr.mxu0 0.0
    %911 = vmatpush1.msra.mxu0 0.0
    %912 = vmatprep.subr.mxu0 0.0
    %913 = vmatpush1.msra.mxu0 0.0
    %914 = vmatprep.subr.mxu0 0.0
    %915 = vmatpush1.msra.mxu0 0.0
    %916 = vmatprep.subr.mxu0 0.0
    %917 = vmatpush1.msra.mxu0 %v146
    %918 = vmatprep.subr.mxu0 0.0
    %919 = vmatpush1.msra.mxu0 %v145
    %920 = vmatprep.subr.mxu0 0.0
    %921 = vmatpush1.msra.mxu0 %v144
    %922 = vmatprep.subr.mxu0 0.0
    %923 = vmatpush1.msra.mxu0 %v143
    %924 = vmatprep.subr.mxu0 0.0
    %925 = vmatpush2.msra.mxu0 0.0
    %926 = vmatprep.subr.mxu0 0.0
    %927 = vmatpush2.msra.mxu0 0.0
    %928 = vmatprep.subr.mxu0 0.0
    %929 = vmatpush2.msra.mxu0 0.0
    %930 = vmatprep.subr.mxu0 0.0
    %931 = vmatpush2.msra.mxu0 0.0
    %932 = vmatprep.subr.mxu0 0.0
    %933 = vmatpush2.msra.mxu0 0.0
    %934 = vmatprep.subr.mxu0 0.0
    %935 = vmatpush2.msra.mxu0 0.0
    %936 = vmatprep.subr.mxu0 0.0
    %937 = vmatpush2.msra.mxu0 0.0
    %938 = vmatprep.subr.mxu0 0.0
    %939 = vmatpush2.msra.mxu0 0.0
    %940 = vmatprep.subr.mxu0 0.0
    %941 = vmatpush2.msra.mxu0 0.0
    %942 = vmatprep.subr.mxu0 0.0
    %943 = vmatpush2.msra.mxu0 0.0
    %944 = vmatprep.subr.mxu0 0.0
    %945 = vmatpush2.msra.mxu0 0.0
    %946 = vmatprep.subr.mxu0 0.0
    %947 = vmatpush2.msra.mxu0 0.0
    %948 = vmatprep.subr.mxu0 0.0
    %949 = vmatpush2.msra.mxu0 0.0
    %950 = vmatprep.subr.mxu0 0.0
    %951 = vmatpush2.msra.mxu0 0.0
    %952 = vmatprep.subr.mxu0 0.0
    %953 = vmatpush2.msra.mxu0 0.0
    %954 = vmatprep.subr.mxu0 0.0
    %955 = vmatpush2.msra.mxu0 0.0
    %956 = vmatprep.mubr.f32.mxu0 0.0
    %957 = vmatmul.mubr.f32.gmra.mxu0 %v890
    %v958 = vpop.f32.mrf.mxu0
    %v959 = vadd.f32 0.0, %v958
    %v960 = vpop.f32.mrf.mxu0
    %961 = vdwg.mxu0
    %v963 = vrot.slane %v959, 1
    %v965 = vadd.f32 %v140, %v963
    %v966 = vxor.u32 %v965, 2147483648
    %v967 = vmul.f32 %v966, 1.442695
    %v968 = vpow.pop %v967
    %v969 = vadd.f32 %v968, 1.0
    %v970 = vrcp.pop %v969
    %v971 = vmul.f32 1.0, %v970
    %v972 = vtanh.pop %v965
    %v974 = vrot.slane %v879, 7
    %v976 = vmul.f32 %v971, %v974
    %978 = vrot.lane.b32.xlu0 %v972, 64
    %v979 = vpop.permute.xlu0 %978
    %v981 = vmul.f32 %v971, %v979
    %983 = vrot.lane.b32.xlu0 %v981, 32
    %v984 = vpop.permute.xlu0 %983
    %v986 = vadd.f32 %v976, %v984
    %v987 = vtanh.pop %v986
    %989 = vrot.lane.b32.xlu0 %v987, 64
    %v990 = vpop.permute.xlu0 %989
    %v992 = vmul.f32 %v971, %v990
    %994 = vrot.lane.b32.xlu0 %v992, 32
    %v995 = vpop.permute.xlu0 %994
    %vm997 = vcmask 261127
    %998 = vst.msk [vmem:[#allocation8 - $0x7] sm:$0x80] %vm997, %v995
    // Predicated region
    $region30: #{encoder_forward.1} parent=1 // pred_check
      _
    $region31: #{encoder_forward.1} parent=1 // pred_check_branch
      %1000 = sbr.rel (0) target = $region33
    $region32: #{encoder_forward.1} parent=1 // pred_region
      %s1002 = ssub.s32 16, 16
      %1003 = vsyncadd [#allocation4], %s1002
      %s1005 = sshll.u32 [#allocation8], 4
      %s1006 = int_to_ptr.vmem [resolvable:$true] %s1005
      %1008 = dma.vmem_to_hbm [thread:$0]  %s1006, 16, %s4, [#allocation4]
    $region33: #{encoder_forward.1} parent=1 // pred_fallthru
      _
    // Predicated region
    $region34: #{encoder_forward.1} parent=1 // pred_check
      _
    $region35: #{encoder_forward.1} parent=1 // pred_check_branch
      %1010 = sbr.rel (0) target = $region37
    $region36: #{encoder_forward.1} parent=1 // pred_region
      %1011 = dma.done [#allocation4], 16
    $region37: #{encoder_forward.1} parent=1 // pred_fallthru
      _
    %1012 = vsyncpa [#allocation3], 1
    %1013 = vsyncpa [#allocation6], 1
    %1014 = vsyncpa [#allocation4], 1

</llo_original>
